<compile_context>
chip_gen: v7x
topology: tpu7x:2x2x1
jax: 0.10.0
libtpu: 0.0.40
codegen_flags: <defaults>
</compile_context>

<pallas_src>
import functools

import jax
import jax.numpy as jnp
from jax.experimental import pallas as pl
from jax.experimental.pallas import tpu as pltpu


def _conv_matmul_kernel(x_ref, w_ref, o_ref):
    # x_ref: (M_blk, K*W*Cin)   im2col rows (bf16)
    # w_ref: (K*W*Cin, W*Cout)  fused block-Toeplitz weights (bf16), resident
    # o_ref: (M_blk, W*Cout)    lane-dense output
    o_ref[...] = jnp.dot(
        x_ref[...], w_ref[...], preferred_element_type=jnp.float32
    ).astype(o_ref.dtype)


def prepare_separable_weights(w_dw, w_pw, W, *, padding=1,
                              compute_dtype=jnp.bfloat16):
    """Fold the 1x1 pointwise into the 3x3 conv and lower the kw tap into a
    block-Toeplitz matmul weight over the UNPADDED width.
    Call once per model (weights are static at inference).
    w_dw: (Cmid, Cin, K, K) [groups=1], w_pw: (Cout, Cmid, 1, 1)."""
    Cmid, Cin, K, Kw = w_dw.shape
    Cout, Cmid_p = w_pw.shape[0], w_pw.shape[1]
    assert Kw == K and Cmid_p == Cmid
    # Kernel assumes a "same" convolution (output H x W == input H x W).
    assert 2 * padding == K - 1, "only 'same' conv supported (2*padding == K-1)"

    # wf[kh, kw, ci, o] = sum_m w_dw[m, ci, kh, kw] * w_pw[o, m]   (exact fold)
    wf = jnp.einsum('mihw,om->hwio',
                    w_dw.astype(jnp.float32),
                    w_pw[:, :, 0, 0].astype(jnp.float32))            # (K, K, Cin, Cout)

    # Toeplitz over unpadded W: output col w reads input col win = w + kw - pad;
    # out-of-range taps are structural zeros (replaces W padding of activations).
    sel = (jnp.arange(W)[None, None, :] ==
           (jnp.arange(W)[None, :, None] + jnp.arange(K)[:, None, None] - padding)
           ).astype(jnp.float32)                                      # (K, W_out, W_in)
    wlow = jnp.einsum('hkio,kwn->hniwo', wf, sel)                     # (K, W_in, Cin, W_out, Cout)
    return wlow.reshape(K * W * Cin, W * Cout).astype(compute_dtype)


def _pick_batch_per_step(N, H, target_rows=256):
    """Largest exact divisor of N with <= target_rows rows per step, keeping
    >= 2 grid steps whenever N >= 2 (so v7x's 2nd TensorCore is used) and an
    (8,·)-aligned row block."""
    best = 1
    for nb in range(1, N + 1):
        if N % nb:
            continue
        if nb > 1 and nb * H > target_rows:
            break
        if N >= 2 and N // nb < 2:
            continue
        if (nb * H) % 8 == 0 or nb == N:
            best = nb
    return best


@functools.partial(jax.jit, static_argnames=("padding", "stride", "compute_dtype"))
def separable_conv2d(x_nchw, wlow, *, padding=1, stride=1,
                     compute_dtype=jnp.bfloat16):
    """x_nchw: (N, Cin, H, W); wlow: prepared (K*W*Cin, W*Cout) fused weights.
    Returns (N, Cout, H, W).  stride=1, groups=1 (depth=1), bias=False."""
    if stride != 1:
        raise NotImplementedError("stride != 1 not supported")  # TODO(synk)
    N, Cin, H, W = x_nchw.shape
    K = 2 * padding + 1
    Kc = K * W * Cin
    assert wlow.shape[0] == Kc, ("weights don't match (Cin/W/padding)",
                                 wlow.shape, Kc)
    out_lanes = wlow.shape[1]
    Cout = out_lanes // W
    Hp = H + 2 * padding

    # ---- activations: NCHW -> NHWC, pad H only, im2col over kh ---------------
    # (one fused XLA producer under jit; input layout is NCHW per the torch spec)
    x_nhwc = jnp.transpose(x_nchw, (0, 2, 3, 1))                      # (N, H, W, Cin)
    xp = jnp.pad(x_nhwc, ((0, 0), (padding, padding), (0, 0), (0, 0)))
    xp = xp.reshape(N, Hp, W * Cin)                                   # (N, Hp, W*Cin)
    xcol = jnp.stack([xp[:, kh:kh + H, :] for kh in range(K)], axis=2)  # (N, H, K, W*Cin)
    xcol = xcol.reshape(N * H, Kc).astype(compute_dtype)              # (N*H, K*W*Cin)

    # ---- grid / block selection ----------------------------------------------
    n_per_step = _pick_batch_per_step(N, H)
    M_blk = n_per_step * H
    grid = (N // n_per_step,)

    out_flat = pl.pallas_call(
        _conv_matmul_kernel,
        out_shape=jax.ShapeDtypeStruct((N * H, out_lanes), x_nchw.dtype),
        grid_spec=pltpu.PrefetchScalarGridSpec(
            num_scalar_prefetch=0,
            grid=grid,
            in_specs=[
                pl.BlockSpec((M_blk, Kc), lambda i: (i, 0)),
                # constant index_map -> weights DMA'd once, stay VMEM-resident
                pl.BlockSpec((Kc, out_lanes), lambda i: (0, 0)),
            ],
            out_specs=pl.BlockSpec((M_blk, out_lanes), lambda i: (i, 0)),
        ),
        compiler_params=pltpu.CompilerParams(
            dimension_semantics=("parallel",),
            vmem_limit_bytes=32 * 1024 * 1024,  # explicit; v7x physical VMEM = 64 MiB
        ),
    )(xcol, wlow)

    # (N*H, W*Cout) -> (N, H, W, Cout) -> NCHW
    out_nhwc = out_flat.reshape(N, H, W, Cout)
    return jnp.transpose(out_nhwc, (0, 3, 1, 2))


def _reference(x_nchw, w_dw, w_pw):
    """Pure-JAX reference matching torch semantics (stride=1, pad=1, groups=1, no bias)."""
    y = jax.lax.conv_general_dilated(
        x_nchw, w_dw, window_strides=(1, 1), padding=((1, 1), (1, 1)),
        dimension_numbers=("NCHW", "OIHW", "NCHW"))
    z = jax.lax.conv_general_dilated(
        y, w_pw, window_strides=(1, 1), padding="VALID",
        dimension_numbers=("NCHW", "OIHW", "NCHW"))
    return z


if __name__ == "__main__":
    # Shapes consistent with the module: in_channels=4, out_channels=8,
    # kernel_size=3, stride=1, depth=1, bias=False.
    N, Cin, H, W = 2, 4, 16, 16
    Cout, K, depth, stride = 8, 3, 1, 1
    Cmid = Cout * depth
    padding = 1

    key = jax.random.PRNGKey(0)
    kx, k1, k2 = jax.random.split(key, 3)
    x = jax.random.normal(kx, (N, Cin, H, W), dtype=jnp.float32)
    # deterministic synthetic weights (torch layout OIHW)
    w_dw = jax.random.normal(k1, (Cmid, Cin, K, K), dtype=jnp.float32) * 0.1
    w_pw = jax.random.normal(k2, (Cout, Cmid, 1, 1), dtype=jnp.float32) * 0.1

    # Weight prep once per model (hoisted out of the per-call path).
    wlow = prepare_separable_weights(w_dw, w_pw, W, padding=padding)
    wlow = jax.block_until_ready(wlow)

    out = separable_conv2d(x, wlow, padding=padding, stride=stride)
    out = jax.block_until_ready(out)

    ref = jax.block_until_ready(_reference(x, w_dw, w_pw))
    assert out.shape == (N, Cout, H, W), out.shape
    # bf16 MXU feeds with f32 accumulation -> loosened tolerance vs. pure-f32 ref.
    assert jnp.allclose(out, ref, atol=2e-2, rtol=2e-2), \
        float(jnp.max(jnp.abs(out - ref)))

    print("KERNEL_OK")
</pallas_src>

<mosaic_0001>
module attributes {stable_mosaic.version = 11 : i64} {
  func.func @_conv_matmul_kernel(%arg0: i32, %arg1: memref<16x192xbf16, #tpu.memory_space<vmem>>, %arg2: memref<192x128xbf16, #tpu.memory_space<vmem>>, %arg3: memref<16x128xf32, #tpu.memory_space<vmem>>) attributes {dimension_semantics = [#tpu.dimension_semantics<parallel>], iteration_bounds = array<i64: 2>, scalar_prefetch = 0 : i64, scratch_operands = 0 : i64, tpu.core_type = #tpu.core_type<tc>, window_params = [{transform_indices = @transform_0, window_bounds = array<i64: 16, 192>}, {pipeline_mode = #tpu.pipeline_mode<synchronous>, transform_indices = @transform_1, window_bounds = array<i64: 192, 128>}, {transform_indices = @transform_2, window_bounds = array<i64: 16, 128>}]} {
    %c0 = arith.constant 0 : index
    %c0_0 = arith.constant 0 : index
    %0 = vector.load %arg1[%c0, %c0_0] : memref<16x192xbf16, #tpu.memory_space<vmem>>, vector<16x192xbf16>
    %c0_1 = arith.constant 0 : index
    %c0_2 = arith.constant 0 : index
    %1 = vector.load %arg2[%c0_1, %c0_2] : memref<192x128xbf16, #tpu.memory_space<vmem>>, vector<192x128xbf16>
    %cst = arith.constant dense<0.000000e+00> : vector<16x128xf32>
    %2 = tpu.matmul %0, %1, %cst {dimension_numbers = #tpu.dot_dimension_numbers<[1], [0], [0], [1], [0, 0, 1, 1], [], []>} : vector<16x192xbf16>, vector<192x128xbf16>, vector<16x128xf32> -> vector<16x128xf32>
    %c0_3 = arith.constant 0 : index
    %c0_4 = arith.constant 0 : index
    %3 = vector.load %arg3[%c0_3, %c0_4] : memref<16x128xf32, #tpu.memory_space<vmem>>, vector<16x128xf32>
    tpu.vector_store %arg3[%c0_3, %c0_4], %2 {strides = array<i32>} : memref<16x128xf32, #tpu.memory_space<vmem>>, vector<16x128xf32>,
    return
  }
  func.func @transform_0(%arg0: i32) -> (i32, i32) {
    %c0_i32 = arith.constant 0 : i32
    %c0_i32_0 = arith.constant 0 : i32
    return %arg0, %c0_i32 : i32, i32
  }
  func.func @transform_1(%arg0: i32) -> (i32, i32) {
    %c0_i32 = arith.constant 0 : i32
    %c0_i32_0 = arith.constant 0 : i32
    %c0_i32_1 = arith.constant 0 : i32
    return %c0_i32, %c0_i32_0 : i32, i32
  }
  func.func @transform_2(%arg0: i32) -> (i32, i32) {
    %c0_i32 = arith.constant 0 : i32
    %c0_i32_0 = arith.constant 0 : i32
    return %arg0, %c0_i32 : i32, i32
  }
}

</mosaic_0001>

<llo_original>
// kernel: separable_conv2d.1
$region0: #{separable_conv2d.1}
  #allocation0 [shape = 'u32[]', space=smem, size = 0x4, offset = 0x4, fixed_abs, tag = 'smem constant byte address 0x4 - core index']
  #allocation1 [shape = 'u32[144,128]{1,0:T(1,128)}', space=vmem, size = 0x12000, scoped, tag = 'internal scratch']
  %s0 = inlined_call_operand.vmem [shape: bf16[32,192], index: 0, kind: input, shape index: {}]
  %s1 = inlined_call_operand.vmem [shape: bf16[192,128], index: 1, kind: input, shape index: {}]
  %s2 = inlined_call_operand.vmem [shape: f32[32,128], index: 2, kind: output, shape index: {}]
  %s3 = sld [smem:[#allocation0]]
  $region41: #{separable_conv2d.1} parent=0
    _
  %s5 = ssub.s32 1, %s3
  %s6 = scalar_select 0, %s5, %s3
  loop: start=0, step=1, limit=4
  $region2: #{separable_conv2d.1} parent=0 // loop_pre_header
    _
  $region3: #{separable_conv2d.1} parent=0 // loop_header
    %s8 = sphi 0, %s12
    %p9 = scmp.ge.s32.totalorder %s8, 4
    %s18 = sphi 0, %s20
    %s21 = sphi 0, %s18
    %s22 = sphi 0, %s21
    %s38 = sphi 0, %s22
    %s42 = sphi 0, %s42
    %s44 = sphi 0, %s42
    %s45 = sphi 0, %s44
    %s59 = sphi 0, %s45
    %s65 = sphi 0, %s67
    %s68 = sphi 0, %s65
    %s69 = sphi 0, %s68
    %s85 = sphi 0, %s69
  $region4: #{separable_conv2d.1} parent=0 // loop_header_branch
    %11 = sbr.rel (%p9) target = $region8
  $region5: #{separable_conv2d.1} parent=0 // loop_body
    %s13 = ssub.s32 %s8, 1
    %s14 = ssub.s32 %s8, 2
    %s15 = sadd.s32 %s8, 1
    %s16 = ssub.s32 %s8, %s15
    %p17 = scmp.eq.s32.totalorder %s16, 0
    %s19 = sadd.s32 %s18, 1
    %s20 = scalar_select %p17, %s18, %s19
    %p23 = pneg %p17
    %p24 = scmp.eq.s32.totalorder %s8, 1
    %p25 = por %p23, %p24
    %p26 = scmp.ne.s32.totalorder %s18, %s21
    %p27 = scmp.eq.s32.totalorder %s8, 0
    %p28 = por %p26, %p27
    %p29 = scmp.ne.s32.totalorder %s18, %s21
    %p30 = scmp.eq.s32.totalorder %s13, 1
    %p31 = por %p29, %p30
    %p32 = scmp.ne.s32.totalorder %s21, %s22
    %p33 = scmp.eq.s32.totalorder %s13, 0
    %p34 = por %p32, %p33
    %p35 = scmp.ne.s32.totalorder %s21, %s22
    %p36 = scmp.eq.s32.totalorder %s14, 1
    %p37 = por %p35, %p36
    %p39 = scmp.ne.s32.totalorder %s22, %s38
    %p40 = scmp.eq.s32.totalorder %s14, 0
    %p41 = por %p39, %p40
    %s43 = sadd.s32 %s42, 1
    %p46 = scmp.eq.s32.totalorder %s8, 1
    %p47 = scmp.ne.s32.totalorder %s42, %s44
    %p48 = scmp.eq.s32.totalorder %s8, 0
    %p49 = por %p47, %p48
    %p50 = scmp.ne.s32.totalorder %s42, %s44
    %p51 = scmp.eq.s32.totalorder %s13, 1
    %p52 = por %p50, %p51
    %p53 = scmp.ne.s32.totalorder %s44, %s45
    %p54 = scmp.eq.s32.totalorder %s13, 0
    %p55 = por %p53, %p54
    %p56 = scmp.ne.s32.totalorder %s44, %s45
    %p57 = scmp.eq.s32.totalorder %s14, 1
    %p58 = por %p56, %p57
    %p60 = scmp.ne.s32.totalorder %s45, %s59
    %p61 = scmp.eq.s32.totalorder %s14, 0
    %p62 = por %p60, %p61
    %s63 = ssub.s32 %s8, %s15
    %p64 = scmp.eq.s32.totalorder %s63, 0
    %s66 = sadd.s32 %s65, 1
    %s67 = scalar_select %p64, %s65, %s66
    %p70 = pneg %p64
    %p71 = scmp.eq.s32.totalorder %s8, 1
    %p72 = por %p70, %p71
    %p73 = scmp.ne.s32.totalorder %s65, %s68
    %p74 = scmp.eq.s32.totalorder %s8, 0
    %p75 = por %p73, %p74
    %p76 = scmp.ne.s32.totalorder %s65, %s68
    %p77 = scmp.eq.s32.totalorder %s13, 1
    %p78 = por %p76, %p77
    %p79 = scmp.ne.s32.totalorder %s68, %s69
    %p80 = scmp.eq.s32.totalorder %s13, 0
    %p81 = por %p79, %p80
    %p82 = scmp.ne.s32.totalorder %s68, %s69
    %p83 = scmp.eq.s32.totalorder %s14, 1
    %p84 = por %p82, %p83
    %p86 = scmp.ne.s32.totalorder %s69, %s85
    %p87 = scmp.eq.s32.totalorder %s14, 0
    %p88 = por %p86, %p87
    %p89 = scmp.le.s32.totalorder 1, %s8
    %p90 = scmp.lt.s32.totalorder %s8, 3
    %p91 = pnand %p89, %p90
    %p92 = pneg %p91
    // Predicated region
    $region9: #{separable_conv2d.1} parent=5 // pred_check
      _
    $region10: #{separable_conv2d.1} parent=5 // pred_check_branch
      %94 = sbr.rel (%p91) target = $region12
    $region11: #{separable_conv2d.1} parent=5 // pred_region
      %s95 = ssub.s32 %s8, 1
      // Predicated region
      $region13: #{separable_conv2d.1} parent=11 // pred_check
        %p96 = pneg %p55
      $region14: #{separable_conv2d.1} parent=11 // pred_check_branch
        %98 = sbr.rel (%p96) target = $region16
      $region15: #{separable_conv2d.1} parent=11 // pred_region
        _
      $region16: #{separable_conv2d.1} parent=11 // pred_fallthru
        _
    $region12: #{separable_conv2d.1} parent=5 // pred_fallthru
      _
    %p99 = scmp.lt.s32.totalorder %s8, 2
    // Predicated region
    $region17: #{separable_conv2d.1} parent=5 // pred_check
      %p100 = pneg %p99
    $region18: #{separable_conv2d.1} parent=5 // pred_check_branch
      %102 = sbr.rel (%p100) target = $region20
    $region19: #{separable_conv2d.1} parent=5 // pred_region
      // Predicated region
      $region21: #{separable_conv2d.1} parent=19 // pred_check
        %p103 = pneg %p28
      $region22: #{separable_conv2d.1} parent=19 // pred_check_branch
        %105 = sbr.rel (%p103) target = $region24
      $region23: #{separable_conv2d.1} parent=19 // pred_region
        %s106 = smul.u32 2, %s8
        %p107 = scmp.lt.s32.totalorder %s106, 3
        %s108 = scalar_select %p107, %s106, 3
        %s109 = smul.addr %s108, 2
        %s110 = smul.addr %s109, 4
        %s111 = scalar_lea.vmem %s0, %s110
        %s112 = smul.u32 2, %s8
      $region24: #{separable_conv2d.1} parent=19 // pred_fallthru
        _
    $region20: #{separable_conv2d.1} parent=5 // pred_fallthru
      _
    %p113 = scmp.le.s32.totalorder 1, %s8
    %p114 = scmp.lt.s32.totalorder %s8, 3
    %p115 = pnand %p113, %p114
    %p116 = pneg %p115
    // Predicated region
    $region25: #{separable_conv2d.1} parent=5 // pred_check
      _
    $region26: #{separable_conv2d.1} parent=5 // pred_check_branch
      %118 = sbr.rel (%p115) target = $region28
    $region27: #{separable_conv2d.1} parent=5 // pred_region
      %s119 = ssub.s32 %s8, 1
      %s120 = smul.u32 2, %s13
      %p121 = scmp.lt.s32.totalorder %s120, 3
      %s122 = scalar_select %p121, %s120, 3
      %s123 = smul.addr %s122, 2
      %s124 = smul.addr %s123, 4
      %s125 = scalar_lea.vmem %s0, %s124
      %p126 = pneg %p34
      %p127 = pneg %p31
      %p128 = pneg %p55
      %p129 = pneg %p52
      %p130 = pneg %p81
      %p131 = pneg %p78
      %s132 = smul.u32 2, %s13
      %p133 = scmp.lt.s32.totalorder %s132, 3
      %s134 = scalar_select %p133, %s132, 3
      %s135 = smul.addr %s134, 8
      %s136 = scalar_lea.vmem %s2, %s135
      %s137 = smul.u32 2, %s13
      %p138 = scmp.lt.s32.totalorder %s137, 3
      %s139 = scalar_select %p138, %s137, 3
      %s140 = smul.addr %s139, 2
      %s141 = smul.addr %s140, 4
      %s142 = scalar_lea.vmem %s0, %s141
      %s143 = smul.u32 2, %s13
      %s144 = smul.u32 2, %s13
      %p145 = scmp.lt.s32.totalorder %s144, 3
      %s146 = scalar_select %p145, %s144, 3
      %s147 = smul.addr %s146, 8
      %s148 = scalar_lea.vmem %s2, %s147
      %s149 = smul.u32 2, %s13
      %v151 = vld [vmem:[%s142] sm:$0xff]
      %v152 = vld [vmem:[%s142 + $0x8] sm:$0xff]
      %v153 = vld [vmem:[%s1] sm:$0xf]
      %v154 = vld [vmem:[%s1 + $0x4] sm:$0xf]
      %v155 = vld [vmem:[%s1 + $0x8] sm:$0xf]
      %v156 = vld [vmem:[%s1 + $0xc] sm:$0xf]
      %v157 = vld [vmem:[%s1 + $0x10] sm:$0xf]
      %v158 = vld [vmem:[%s1 + $0x14] sm:$0xf]
      %v159 = vld [vmem:[%s1 + $0x18] sm:$0xf]
      %v160 = vld [vmem:[%s1 + $0x1c] sm:$0xf]
      %v161 = vld [vmem:[%s1 + $0x20] sm:$0xf]
      %v162 = vld [vmem:[%s1 + $0x24] sm:$0xf]
      %v163 = vld [vmem:[%s1 + $0x28] sm:$0xf]
      %v164 = vld [vmem:[%s1 + $0x2c] sm:$0xf]
      %v165 = vld [vmem:[%s1 + $0x30] sm:$0xf]
      %v166 = vld [vmem:[%s1 + $0x34] sm:$0xf]
      %v167 = vld [vmem:[%s1 + $0x38] sm:$0xf]
      %v168 = vld [vmem:[%s1 + $0x3c] sm:$0xf]
      %v169 = vld [vmem:[%s1 + $0x40] sm:$0xf]
      %v170 = vld [vmem:[%s1 + $0x44] sm:$0xf]
      %v171 = vld [vmem:[%s1 + $0x48] sm:$0xf]
      %v172 = vld [vmem:[%s1 + $0x4c] sm:$0xf]
      %v173 = vld [vmem:[%s1 + $0x50] sm:$0xf]
      %v174 = vld [vmem:[%s1 + $0x54] sm:$0xf]
      %v175 = vld [vmem:[%s1 + $0x58] sm:$0xf]
      %v176 = vld [vmem:[%s1 + $0x5c] sm:$0xf]
      %v179 = vunpack.c.l.b16 %v151
      %v180 = vunpack.c.h.b16 %v151
      %v181 = vunpack.c.l.b16 %v152
      %v182 = vunpack.c.h.b16 %v152
      %v183 = vpack.c.b16 %v181, %v179
      %v184 = vpack.c.b16 %v182, %v180
      %v210 = vunpack.c.l.b16 %v153
      %v211 = vunpack.c.l.b16 %v154
      %v212 = vunpack.c.l.b16 %v155
      %v213 = vunpack.c.l.b16 %v156
      %v214 = vunpack.c.l.b16 %v157
      %v215 = vunpack.c.l.b16 %v158
      %v216 = vunpack.c.l.b16 %v159
      %v217 = vunpack.c.l.b16 %v160
      %v218 = vunpack.c.l.b16 %v161
      %v219 = vunpack.c.l.b16 %v162
      %v220 = vunpack.c.l.b16 %v163
      %v221 = vunpack.c.l.b16 %v164
      %v222 = vunpack.c.l.b16 %v165
      %v223 = vunpack.c.l.b16 %v166
      %v224 = vunpack.c.l.b16 %v167
      %v225 = vunpack.c.l.b16 %v168
      %v226 = vunpack.c.l.b16 %v169
      %v227 = vunpack.c.l.b16 %v170
      %v228 = vunpack.c.l.b16 %v171
      %v229 = vunpack.c.l.b16 %v172
      %v230 = vunpack.c.l.b16 %v173
      %v231 = vunpack.c.l.b16 %v174
      %v232 = vunpack.c.l.b16 %v175
      %v233 = vunpack.c.l.b16 %v176
      %v234 = vpack.c.b16 %v211, %v210
      %v235 = vpack.c.b16 %v213, %v212
      %v236 = vpack.c.b16 %v215, %v214
      %v237 = vpack.c.b16 %v217, %v216
      %v238 = vpack.c.b16 %v219, %v218
      %v239 = vpack.c.b16 %v221, %v220
      %v240 = vpack.c.b16 %v223, %v222
      %v241 = vpack.c.b16 %v225, %v224
      %v242 = vpack.c.b16 %v227, %v226
      %v243 = vpack.c.b16 %v229, %v228
      %v244 = vpack.c.b16 %v231, %v230
      %v245 = vpack.c.b16 %v233, %v232
      %vm258 = vcmask 523264
      %v260 = vsel %vm258, %v184, 0
      %262 = vmatprep.subr.bf16.mxu0 0
      %263 = vmatpush1.bf16.msra.mxu0 %v234
      %264 = vmatprep.subr.bf16.mxu0 0
      %265 = vmatpush1.bf16.msra.mxu0 %v235
      %266 = vmatprep.subr.bf16.mxu0 0
      %267 = vmatpush1.bf16.msra.mxu0 %v236
      %268 = vmatprep.subr.bf16.mxu0 0
      %269 = vmatpush1.bf16.msra.mxu0 %v237
      %270 = vmatprep.subr.bf16.mxu0 0
      %271 = vmatpush1.bf16.msra.mxu0 %v238
      %272 = vmatprep.subr.bf16.mxu0 0
      %273 = vmatpush1.bf16.msra.mxu0 %v239
      %274 = vmatprep.subr.bf16.mxu0 0
      %275 = vmatpush1.bf16.msra.mxu0 %v240
      %276 = vmatprep.subr.bf16.mxu0 0
      %277 = vmatpush1.bf16.msra.mxu0 %v241
      %278 = vmatprep.subr.bf16.mxu0 0
      %279 = vmatpush1.bf16.msra.mxu0 %v242
      %280 = vmatprep.subr.bf16.mxu0 0
      %281 = vmatpush1.bf16.msra.mxu0 %v243
      %282 = vmatprep.subr.bf16.mxu0 0
      %283 = vmatpush1.bf16.msra.mxu0 %v244
      %284 = vmatprep.subr.bf16.mxu0 0
      %285 = vmatpush1.bf16.msra.mxu0 %v245
      %286 = vmatprep.subr.bf16.mxu0 0
      %287 = vmatpush1.bf16.msra.mxu0 0
      %288 = vmatprep.subr.bf16.mxu0 0
      %289 = vmatpush1.bf16.msra.mxu0 0
      %290 = vmatprep.subr.bf16.mxu0 0
      %291 = vmatpush1.bf16.msra.mxu0 0
      %292 = vmatprep.subr.bf16.mxu0 0
      %293 = vmatpush1.bf16.msra.mxu0 0
      %294 = vmatprep.mubr.bf16.mxu0 %v260
      %295 = vmatmul.mubr.bf16.gmra.mrb[0].mxu0 %v183
      %v296 = vpop.f32.mrb[0].mxu0
      %v297 = vadd.f32 0.0, %v296
      %v298 = vpop.f32.mrb[0].mxu0
      %v299 = vpop.f32.mrb[0].mxu0
      %v300 = vadd.f32 0.0, %v299
      %v301 = vpop.f32.mrb[0].mxu0
      %302 = vdwg.mxu0
      %303 = vst [vmem:[%s148] sm:$0xff] %v297
      %304 = vst [vmem:[%s148 + $0x8] sm:$0xff] %v300
      %s305 = smul.u32 2, %s13
      %p306 = scmp.lt.s32.totalorder %s305, 3
      %s307 = scalar_select %p306, %s305, 3
      %s308 = smul.addr %s307, 8
      %s309 = scalar_lea.vmem %s2, %s308
      // Predicated region
      $region29: #{separable_conv2d.1} parent=27 // pred_check
        %p310 = pneg %p78
      $region30: #{separable_conv2d.1} parent=27 // pred_check_branch
        %312 = sbr.rel (%p310) target = $region32
      $region31: #{separable_conv2d.1} parent=27 // pred_region
        %s313 = smul.u32 2, %s13
      $region32: #{separable_conv2d.1} parent=27 // pred_fallthru
        _
    $region28: #{separable_conv2d.1} parent=5 // pred_fallthru
      _
    %p314 = scmp.le.s32.totalorder 2, %s8
    // Predicated region
    $region33: #{separable_conv2d.1} parent=5 // pred_check
      %p315 = pneg %p314
    $region34: #{separable_conv2d.1} parent=5 // pred_check_branch
      %317 = sbr.rel (%p315) target = $region36
    $region35: #{separable_conv2d.1} parent=5 // pred_region
      %s318 = ssub.s32 %s8, 2
      // Predicated region
      $region37: #{separable_conv2d.1} parent=35 // pred_check
        %p319 = pneg %p84
      $region38: #{separable_conv2d.1} parent=35 // pred_check_branch
        %321 = sbr.rel (%p319) target = $region40
      $region39: #{separable_conv2d.1} parent=35 // pred_region
        %s322 = smul.u32 2, %s14
        %p323 = scmp.lt.s32.totalorder %s322, 3
        %s324 = scalar_select %p323, %s322, 3
        %s325 = smul.addr %s324, 8
        %s326 = scalar_lea.vmem %s2, %s325
      $region40: #{separable_conv2d.1} parent=35 // pred_fallthru
        _
    $region36: #{separable_conv2d.1} parent=5 // pred_fallthru
      _
  $region6: #{separable_conv2d.1} parent=0 // loop_footer
    %s12 = sadd.s32 1, %s8
  $region7: #{separable_conv2d.1} parent=0 // loop_footer_branch
    %7 = sbr.rel target = $region3
  $region8: #{separable_conv2d.1} parent=0 // loop_exit
    _

</llo_original>
